<compile_context>
chip_gen: v5e
topology: v5e:2x2
jax: 0.10.0
libtpu: 0.0.40
codegen_flags: <defaults>
</compile_context>

<pallas_src>
import jax
import jax.numpy as jnp
from jax.experimental import pallas as pl
from jax.experimental.pallas import tpu as pltpu

LATENT_DIM = 15
INPUT_DIM = 64
BATCH = 8

H1, H2, H3 = 512, 256, 128     # hidden widths of fc1 / fc2 / fc3
HEAD_W = 128                   # lane-dense fused-head / output slab width
EPS_W = 16                     # eps HBM width (>= LATENT_DIM, tiny)
MU_SLOT = 32                   # mu lanes [32, 32+15) in the output slab
LV_SLOT = 64                   # logvar lanes [64, 64+15) in the output slab


def _round_up(x, m):
    return ((x + m - 1) // m) * m


def vae_kernel(x_ref, w1_ref, w2_ref, w3_ref, wh_ref, b_ref, eps_ref, out_ref):
    bf16 = jnp.bfloat16
    f32 = jnp.float32

    # all biases come from one small (4, 512) f32 table
    b1 = b_ref[0:1, :]            # (1, 512)
    b2 = b_ref[1:2, 0:H2]         # (1, 256)
    b3 = b_ref[2:3, 0:H3]         # (1, 128)
    bh = b_ref[3:4, 0:HEAD_W]     # (1, 128)  packed head bias

    # fc1/fc2/fc3 + relu  (bf16 operands, f32 accumulation on the MXU)
    h = jnp.maximum(jnp.dot(x_ref[...].astype(bf16), w1_ref[...],
                            preferred_element_type=f32) + b1, 0.0)
    h = jnp.maximum(jnp.dot(h.astype(bf16), w2_ref[...],
                            preferred_element_type=f32) + b2, 0.0)
    h = jnp.maximum(jnp.dot(h.astype(bf16), w3_ref[...],
                            preferred_element_type=f32) + b3, 0.0)

    # fused heads, ONE [128,128] matmul whose columns already sit at the output
    # slab positions: lanes [0,15)=mu, [32,47)=mu (copy), [64,79)=logvar, rest 0
    heads = jnp.dot(h.astype(bf16), wh_ref[...],
                    preferred_element_type=f32) + bh

    # align logvar onto lanes [0,15): a 64-lane rotation of 128 lanes is
    # symmetric, so the roll direction cannot matter.  Junk lanes stay finite
    # and are zeroed by eps128 below.
    lv_al = pltpu.roll(heads, shift=LV_SLOT, axis=1)
    std_al = jnp.exp(0.5 * lv_al)                      # EUP slot

    # widen eps (TM,16) -> (TM,128); padded lanes are exactly 0
    tm = eps_ref.shape[0]
    eps128 = jnp.concatenate(
        [eps_ref[...], jnp.zeros((tm, HEAD_W - EPS_W), f32)], axis=1)

    # z = mu + eps * exp(0.5*logvar) lands on lanes [0,15); lanes [32,47) keep
    # mu and [64,79) keep logvar untouched (eps128 is 0 there).  One unmasked
    # lane-dense 128-wide store.
    out_ref[...] = heads + eps128 * std_al


def pack_params(params):
    """Cast weights to bf16, fuse the two heads into one lane-dense [128,128]
    matrix laid out at the output-slab positions, and pack all biases into one
    small (4, 512) f32 table."""
    w1, b1, w2, b2, w3, b3, wm, bm, wv, bv = params

    wh = jnp.zeros((H3, HEAD_W), jnp.float32)
    wh = wh.at[:, 0:LATENT_DIM].set(wm)                          # mu (for z)
    wh = wh.at[:, MU_SLOT:MU_SLOT + LATENT_DIM].set(wm)          # mu (output copy)
    wh = wh.at[:, LV_SLOT:LV_SLOT + LATENT_DIM].set(wv)          # logvar

    b_all = jnp.zeros((4, H1), jnp.float32)
    b_all = b_all.at[0, :H1].set(b1[0])
    b_all = b_all.at[1, :H2].set(b2[0])
    b_all = b_all.at[2, :H3].set(b3[0])
    b_all = b_all.at[3, 0:LATENT_DIM].set(bm[0])
    b_all = b_all.at[3, MU_SLOT:MU_SLOT + LATENT_DIM].set(bm[0])
    b_all = b_all.at[3, LV_SLOT:LV_SLOT + LATENT_DIM].set(bv[0])

    bf16 = jnp.bfloat16
    return (w1.astype(bf16), w2.astype(bf16), w3.astype(bf16),
            wh.astype(bf16), b_all)


def _choose_tile(b8):
    """Pick the batch tile: large tiles for HBM efficiency, but keep >= 2 grid
    steps when the batch allows it so the parallel grid axis can shard across
    both TensorCores on v7x."""
    if b8 < 16:
        return b8
    n_steps = max(2, -(-b8 // 512))          # tiles capped around 512 rows
    return _round_up(-(-b8 // n_steps), 8)


def vae_forward(x, packed, eps):
    """x: [B, INPUT_DIM] f32; eps: [B, LATENT_DIM] f32; returns (z, mu, logvar)."""
    B = x.shape[0]
    b8 = _round_up(max(B, 1), 8)
    TM = _choose_tile(b8)
    B_pad = _round_up(b8, TM)

    w1, w2, w3, wh, b_all = packed

    # avoid the full-batch pad copy when the batch is already tile-aligned
    if B_pad == B:
        x_p = x
    else:
        x_p = jnp.zeros((B_pad, INPUT_DIM), x.dtype).at[:B].set(x)
    # eps stays narrow ([B_pad, 16] f32) -> ~8x less eps HBM traffic than a
    # 128-wide zero pad; padded lanes/rows are exactly 0.
    eps_p = jnp.zeros((B_pad, EPS_W), jnp.float32).at[:B, :LATENT_DIM].set(eps)

    def resident(a):
        # full-array block, constant index_map -> stays VMEM-resident across the grid
        return pl.BlockSpec(a.shape, lambda i: (0, 0))

    out = pl.pallas_call(
        vae_kernel,
        out_shape=jax.ShapeDtypeStruct((B_pad, HEAD_W), jnp.float32),
        grid=(B_pad // TM,),
        in_specs=[
            pl.BlockSpec((TM, INPUT_DIM), lambda i: (i, 0)),   # x tile
            resident(w1), resident(w2), resident(w3), resident(wh),
            resident(b_all),
            pl.BlockSpec((TM, EPS_W), lambda i: (i, 0)),       # eps tile (narrow)
        ],
        out_specs=pl.BlockSpec((TM, HEAD_W), lambda i: (i, 0)),
        compiler_params=pltpu.CompilerParams(
            dimension_semantics=("parallel",),   # shards batch tiles across TCs (v7x)
        ),
    )(x_p, w1, w2, w3, wh, b_all, eps_p)

    z = out[:B, 0:LATENT_DIM]
    mu = out[:B, MU_SLOT:MU_SLOT + LATENT_DIM]
    logvar = out[:B, LV_SLOT:LV_SLOT + LATENT_DIM]
    return z, mu, logvar


def init_params(key, input_dim, latent_dim):
    """Deterministic small-scale init; weights are [in, out] (transposed vs torch)."""
    dims = [(input_dim, H1), (H1, H2), (H2, H3),
            (H3, latent_dim), (H3, latent_dim)]
    keys = jax.random.split(key, 2 * len(dims))
    params = []
    for i, (din, dout) in enumerate(dims):
        scale = 1.0 / jnp.sqrt(jnp.float32(din))
        w = jax.random.uniform(keys[2 * i], (din, dout), jnp.float32,
                               minval=-scale, maxval=scale)
        b = jax.random.uniform(keys[2 * i + 1], (1, dout), jnp.float32,
                               minval=-scale, maxval=scale)
        params += [w, b]
    return tuple(params)


def reference_forward(x, params, eps):
    """Plain-JAX reference mirroring the kernel's bf16-weight / f32-accumulate math."""
    w1, b1, w2, b2, w3, b3, wm, bm, wv, bv = params
    bf16 = jnp.bfloat16

    def lin(h, w, b):
        return jnp.dot(h.astype(bf16), w.astype(bf16),
                       preferred_element_type=jnp.float32) + b

    h = jnp.maximum(lin(x, w1, b1), 0.0)
    h = jnp.maximum(lin(h, w2, b2), 0.0)
    h = jnp.maximum(lin(h, w3, b3), 0.0)
    mu = lin(h, wm, bm)
    logvar = lin(h, wv, bv)
    z = mu + eps * jnp.exp(0.5 * logvar)
    return z, mu, logvar


if __name__ == "__main__":
    key = jax.random.PRNGKey(0)
    k_param, k_x, k_eps = jax.random.split(key, 3)

    params = init_params(k_param, INPUT_DIM, LATENT_DIM)
    packed = pack_params(params)
    x = jax.random.normal(k_x, (BATCH, INPUT_DIM), jnp.float32)
    eps = jax.random.normal(k_eps, (BATCH, LATENT_DIM), jnp.float32)

    z, mu, logvar = jax.jit(vae_forward)(x, packed, eps)
    jax.block_until_ready((z, mu, logvar))

    z_ref, mu_ref, lv_ref = reference_forward(x, params, eps)
    assert jnp.allclose(mu, mu_ref, atol=1e-2, rtol=1e-2), "mu mismatch"
    assert jnp.allclose(logvar, lv_ref, atol=1e-2, rtol=1e-2), "logvar mismatch"
    assert jnp.allclose(z, z_ref, atol=1e-2, rtol=1e-2), "z mismatch"

    print("KERNEL_OK")
</pallas_src>

<mosaic_0001>
module attributes {stable_mosaic.version = 11 : i64} {
  func.func @vae_kernel(%arg0: i32, %arg1: memref<8x64xf32, #tpu.memory_space<vmem>>, %arg2: memref<64x512xbf16, #tpu.memory_space<vmem>>, %arg3: memref<512x256xbf16, #tpu.memory_space<vmem>>, %arg4: memref<256x128xbf16, #tpu.memory_space<vmem>>, %arg5: memref<128x128xbf16, #tpu.memory_space<vmem>>, %arg6: memref<4x512xf32, #tpu.memory_space<vmem>>, %arg7: memref<8x16xf32, #tpu.memory_space<vmem>>, %arg8: memref<8x128xf32, #tpu.memory_space<vmem>>) attributes {dimension_semantics = [#tpu.dimension_semantics<parallel>], iteration_bounds = array<i64: 1>, scalar_prefetch = 0 : i64, scratch_operands = 0 : i64, tpu.core_type = #tpu.core_type<tc>, window_params = [{transform_indices = @transform_0, window_bounds = array<i64: 8, 64>}, {pipeline_mode = #tpu.pipeline_mode<synchronous>, transform_indices = @transform_1, window_bounds = array<i64: 64, 512>}, {pipeline_mode = #tpu.pipeline_mode<synchronous>, transform_indices = @transform_2, window_bounds = array<i64: 512, 256>}, {pipeline_mode = #tpu.pipeline_mode<synchronous>, transform_indices = @transform_3, window_bounds = array<i64: 256, 128>}, {pipeline_mode = #tpu.pipeline_mode<synchronous>, transform_indices = @transform_4, window_bounds = array<i64: 128, 128>}, {pipeline_mode = #tpu.pipeline_mode<synchronous>, transform_indices = @transform_5, window_bounds = array<i64: 4, 512>}, {transform_indices = @transform_6, window_bounds = array<i64: 8, 16>}, {transform_indices = @transform_7, window_bounds = array<i64: 8, 128>}]} {
    %c0 = arith.constant 0 : index
    %c0_0 = arith.constant 0 : index
    %0 = vector.load %arg6[%c0, %c0_0] : memref<4x512xf32, #tpu.memory_space<vmem>>, vector<1x512xf32>
    %c1 = arith.constant 1 : index
    %c0_1 = arith.constant 0 : index
    %1 = vector.load %arg6[%c1, %c0_1] : memref<4x512xf32, #tpu.memory_space<vmem>>, vector<1x256xf32>
    %c2 = arith.constant 2 : index
    %c0_2 = arith.constant 0 : index
    %2 = vector.load %arg6[%c2, %c0_2] : memref<4x512xf32, #tpu.memory_space<vmem>>, vector<1x128xf32>
    %c3 = arith.constant 3 : index
    %c0_3 = arith.constant 0 : index
    %3 = vector.load %arg6[%c3, %c0_3] : memref<4x512xf32, #tpu.memory_space<vmem>>, vector<1x128xf32>
    %c0_4 = arith.constant 0 : index
    %c0_5 = arith.constant 0 : index
    %4 = vector.load %arg1[%c0_4, %c0_5] : memref<8x64xf32, #tpu.memory_space<vmem>>, vector<8x64xf32>
    %5 = arith.truncf %4 : vector<8x64xf32> to vector<8x64xbf16>
    %c0_6 = arith.constant 0 : index
    %c0_7 = arith.constant 0 : index
    %6 = vector.load %arg2[%c0_6, %c0_7] : memref<64x512xbf16, #tpu.memory_space<vmem>>, vector<64x512xbf16>
    %cst = arith.constant dense<0.000000e+00> : vector<8x512xf32>
    %7 = tpu.matmul %5, %6, %cst {dimension_numbers = #tpu.dot_dimension_numbers<[1], [0], [0], [1], [0, 0, 1, 1], [], []>} : vector<8x64xbf16>, vector<64x512xbf16>, vector<8x512xf32> -> vector<8x512xf32>
    %8 = vector.broadcast %0 : vector<1x512xf32> to vector<8x512xf32>
    %9 = arith.addf %7, %8 : vector<8x512xf32>
    %cst_8 = arith.constant 0.000000e+00 : f32
    %10 = vector.broadcast %cst_8 : f32 to vector<8x512xf32>
    %11 = arith.maximumf %9, %10 : vector<8x512xf32>
    %12 = arith.truncf %11 : vector<8x512xf32> to vector<8x512xbf16>
    %c0_9 = arith.constant 0 : index
    %c0_10 = arith.constant 0 : index
    %13 = vector.load %arg3[%c0_9, %c0_10] : memref<512x256xbf16, #tpu.memory_space<vmem>>, vector<512x256xbf16>
    %cst_11 = arith.constant dense<0.000000e+00> : vector<8x256xf32>
    %14 = tpu.matmul %12, %13, %cst_11 {dimension_numbers = #tpu.dot_dimension_numbers<[1], [0], [0], [1], [0, 0, 1, 1], [], []>} : vector<8x512xbf16>, vector<512x256xbf16>, vector<8x256xf32> -> vector<8x256xf32>
    %15 = vector.broadcast %1 : vector<1x256xf32> to vector<8x256xf32>
    %16 = arith.addf %14, %15 : vector<8x256xf32>
    %cst_12 = arith.constant 0.000000e+00 : f32
    %17 = vector.broadcast %cst_12 : f32 to vector<8x256xf32>
    %18 = arith.maximumf %16, %17 : vector<8x256xf32>
    %19 = arith.truncf %18 : vector<8x256xf32> to vector<8x256xbf16>
    %c0_13 = arith.constant 0 : index
    %c0_14 = arith.constant 0 : index
    %20 = vector.load %arg4[%c0_13, %c0_14] : memref<256x128xbf16, #tpu.memory_space<vmem>>, vector<256x128xbf16>
    %cst_15 = arith.constant dense<0.000000e+00> : vector<8x128xf32>
    %21 = tpu.matmul %19, %20, %cst_15 {dimension_numbers = #tpu.dot_dimension_numbers<[1], [0], [0], [1], [0, 0, 1, 1], [], []>} : vector<8x256xbf16>, vector<256x128xbf16>, vector<8x128xf32> -> vector<8x128xf32>
    %22 = vector.broadcast %2 : vector<1x128xf32> to vector<8x128xf32>
    %23 = arith.addf %21, %22 : vector<8x128xf32>
    %cst_16 = arith.constant 0.000000e+00 : f32
    %24 = vector.broadcast %cst_16 : f32 to vector<8x128xf32>
    %25 = arith.maximumf %23, %24 : vector<8x128xf32>
    %26 = arith.truncf %25 : vector<8x128xf32> to vector<8x128xbf16>
    %c0_17 = arith.constant 0 : index
    %c0_18 = arith.constant 0 : index
    %27 = vector.load %arg5[%c0_17, %c0_18] : memref<128x128xbf16, #tpu.memory_space<vmem>>, vector<128x128xbf16>
    %cst_19 = arith.constant dense<0.000000e+00> : vector<8x128xf32>
    %28 = tpu.matmul %26, %27, %cst_19 {dimension_numbers = #tpu.dot_dimension_numbers<[1], [0], [0], [1], [0, 0, 1, 1], [], []>} : vector<8x128xbf16>, vector<128x128xbf16>, vector<8x128xf32> -> vector<8x128xf32>
    %29 = vector.broadcast %3 : vector<1x128xf32> to vector<8x128xf32>
    %30 = arith.addf %28, %29 : vector<8x128xf32>
    %c64_i32 = arith.constant 64 : i32
    %31 = tpu.dynamic_rotate %30 by %c64_i32 dim 1 : vector<8x128xf32>, i32 -> vector<8x128xf32>
    %cst_20 = arith.constant 5.000000e-01 : f32
    %32 = vector.broadcast %cst_20 : f32 to vector<8x128xf32>
    %33 = arith.mulf %32, %31 : vector<8x128xf32>
    %34 = math.exp %33 : vector<8x128xf32>
    %c0_21 = arith.constant 0 : index
    %c0_22 = arith.constant 0 : index
    %35 = vector.load %arg7[%c0_21, %c0_22] : memref<8x16xf32, #tpu.memory_space<vmem>>, vector<8x16xf32>
    %cst_23 = arith.constant 0.000000e+00 : f32
    %36 = vector.broadcast %cst_23 : f32 to vector<8x112xf32>
    %37 = tpu.concatenate %35, %36 in 1 : vector<8x16xf32>, vector<8x112xf32> -> vector<8x128xf32>
    %38 = arith.mulf %37, %34 : vector<8x128xf32>
    %39 = arith.addf %30, %38 : vector<8x128xf32>
    %c0_24 = arith.constant 0 : index
    %c0_25 = arith.constant 0 : index
    %40 = vector.load %arg8[%c0_24, %c0_25] : memref<8x128xf32, #tpu.memory_space<vmem>>, vector<8x128xf32>
    tpu.vector_store %arg8[%c0_24, %c0_25], %39 {strides = array<i32>} : memref<8x128xf32, #tpu.memory_space<vmem>>, vector<8x128xf32>,
    return
  }
  func.func @transform_0(%arg0: i32) -> (i32, i32) {
    %c0_i32 = arith.constant 0 : i32
    %c0_i32_0 = arith.constant 0 : i32
    return %arg0, %c0_i32 : i32, i32
  }
  func.func @transform_1(%arg0: i32) -> (i32, i32) {
    %c0_i32 = arith.constant 0 : i32
    %c0_i32_0 = arith.constant 0 : i32
    %c0_i32_1 = arith.constant 0 : i32
    return %c0_i32, %c0_i32_0 : i32, i32
  }
  func.func @transform_2(%arg0: i32) -> (i32, i32) {
    %c0_i32 = arith.constant 0 : i32
    %c0_i32_0 = arith.constant 0 : i32
    %c0_i32_1 = arith.constant 0 : i32
    return %c0_i32, %c0_i32_0 : i32, i32
  }
  func.func @transform_3(%arg0: i32) -> (i32, i32) {
    %c0_i32 = arith.constant 0 : i32
    %c0_i32_0 = arith.constant 0 : i32
    %c0_i32_1 = arith.constant 0 : i32
    return %c0_i32, %c0_i32_0 : i32, i32
  }
  func.func @transform_4(%arg0: i32) -> (i32, i32) {
    %c0_i32 = arith.constant 0 : i32
    %c0_i32_0 = arith.constant 0 : i32
    %c0_i32_1 = arith.constant 0 : i32
    return %c0_i32, %c0_i32_0 : i32, i32
  }
  func.func @transform_5(%arg0: i32) -> (i32, i32) {
    %c0_i32 = arith.constant 0 : i32
    %c0_i32_0 = arith.constant 0 : i32
    %c0_i32_1 = arith.constant 0 : i32
    return %c0_i32, %c0_i32_0 : i32, i32
  }
  func.func @transform_6(%arg0: i32) -> (i32, i32) {
    %c0_i32 = arith.constant 0 : i32
    %c0_i32_0 = arith.constant 0 : i32
    return %arg0, %c0_i32 : i32, i32
  }
  func.func @transform_7(%arg0: i32) -> (i32, i32) {
    %c0_i32 = arith.constant 0 : i32
    %c0_i32_0 = arith.constant 0 : i32
    return %arg0, %c0_i32 : i32, i32
  }
}

</mosaic_0001>

<llo_original>
// kernel: vae_forward.1
$region0: #{vae_forward.1}
  #allocation0 [shape = 'u32[]', space=smem, size = 0x4, offset = 0x4, fixed_abs, tag = 'smem constant byte address 0x4 - core index']
  #allocation1 [shape = 'u32[72,128]{1,0:T(1,128)}', space=vmem, size = 0x9000, scoped, tag = 'internal scratch']
  %s0 = inlined_call_operand.hbm [shape: f32[8,64], index: 0, kind: input, shape index: {}]
  %s1 = inlined_call_operand.hbm [shape: bf16[64,512], index: 1, kind: input, shape index: {}]
  %s2 = inlined_call_operand.hbm [shape: bf16[512,256], index: 2, kind: input, shape index: {}]
  %s3 = inlined_call_operand.hbm [shape: bf16[256,128], index: 3, kind: input, shape index: {}]
  %s4 = inlined_call_operand.hbm [shape: bf16[128,128], index: 4, kind: input, shape index: {}]
  %s5 = inlined_call_operand.vmem [shape: f32[4,512], index: 5, kind: input, shape index: {}]
  %s6 = inlined_call_operand.vmem [shape: f32[8,16], index: 6, kind: input, shape index: {}]
  %s7 = inlined_call_operand.vmem [shape: f32[8,128], index: 7, kind: output, shape index: {}]
  %s8 = sld [smem:[#allocation0]]
  $region58: #{vae_forward.1} parent=0
    _
  %s10 = ssub.s32 1, %s8
  %s11 = scalar_select 0, %s10, %s8
  $region1: #{vae_forward.1} parent=0
    #allocation2 [shape = 'u8[4096]{0}', space=vmem, size = 0x1000, scoped, tag = 'input window, operand 0, single buffered']
    #allocation3 [shape = 's32[1]{0}', space=sflag, size = 0x4, scoped, tag = 'scoped memory for vae_forward.1']
    #allocation4 [shape = 'u8[65536]{0}', space=vmem, size = 0x10000, scoped, tag = 'input window, operand 1, single buffered']
    #allocation5 [shape = 's32[1]{0}', space=sflag, size = 0x4, scoped, tag = 'scoped memory for vae_forward.1']
    #allocation6 [shape = 'u8[262144]{0}', space=vmem, size = 0x40000, scoped, tag = 'input window, operand 2, single buffered']
    #allocation7 [shape = 'u8[65536]{0}', space=vmem, size = 0x10000, scoped, tag = 'input window, operand 3, single buffered']
    #allocation8 [shape = 's32[1]{0}', space=sflag, size = 0x4, scoped, tag = 'scoped memory for vae_forward.1']
    #allocation9 [shape = 'u8[32768]{0}', space=vmem, size = 0x8000, scoped, tag = 'input window, operand 4, single buffered']
    %12 = vsyncpa [#allocation3], 0
    %13 = vsyncpa [#allocation5], 0
    %14 = vsyncpa [#allocation8], 0
    // Predicated region
    $region2: #{vae_forward.1} parent=1 // pred_check
      _
    $region3: #{vae_forward.1} parent=1 // pred_check_branch
      %16 = sbr.rel (0) target = $region5
    $region4: #{vae_forward.1} parent=1 // pred_region
      %18 = vsyncadd [#allocation3], 0
      %s20 = sshll.u32 %s0, 4
      %s21 = int_to_ptr.hbm [resolvable:$true] %s20
      %s22 = sshll.u32 [#allocation2], 4
      %s23 = int_to_ptr.vmem [resolvable:$true] %s22
      %25 = dma.hbm_to_vmem [thread:$0]  %s21, 128, %s23, [#allocation3]
    $region5: #{vae_forward.1} parent=1 // pred_fallthru
      _
    // Predicated region
    $region6: #{vae_forward.1} parent=1 // pred_check
      _
    $region7: #{vae_forward.1} parent=1 // pred_check_branch
      %27 = sbr.rel (0) target = $region9
    $region8: #{vae_forward.1} parent=1 // pred_region
      %29 = vsyncadd [#allocation5], 0
      %s30 = sshll.u32 %s1, 4
      %s31 = int_to_ptr.hbm [resolvable:$true] %s30
      %s32 = sshll.u32 [#allocation4], 4
      %s33 = int_to_ptr.vmem [resolvable:$true] %s32
      %38 = dma.hbm_to_vmem [thread:$0]  %s31, 2048, %s33, [#allocation5], 256, 256, 16
    $region9: #{vae_forward.1} parent=1 // pred_fallthru
      _
    // Predicated region
    $region10: #{vae_forward.1} parent=1 // pred_check
      _
    $region11: #{vae_forward.1} parent=1 // pred_check_branch
      %40 = sbr.rel (0) target = $region13
    $region12: #{vae_forward.1} parent=1 // pred_region
      %42 = vsyncadd [#allocation5], 0
      %s43 = sshll.u32 %s2, 4
      %s44 = int_to_ptr.hbm [resolvable:$true] %s43
      %s45 = sshll.u32 [#allocation6], 4
      %s46 = int_to_ptr.vmem [resolvable:$true] %s45
      %51 = dma.hbm_to_vmem [thread:$0]  %s44, 8192, %s46, [#allocation5], 128, 128, 8
    $region13: #{vae_forward.1} parent=1 // pred_fallthru
      _
    // Predicated region
    $region14: #{vae_forward.1} parent=1 // pred_check
      _
    $region15: #{vae_forward.1} parent=1 // pred_check_branch
      %53 = sbr.rel (0) target = $region17
    $region16: #{vae_forward.1} parent=1 // pred_region
      %55 = vsyncadd [#allocation8], 0
      %s56 = sshll.u32 %s3, 4
      %s57 = int_to_ptr.hbm [resolvable:$true] %s56
      %s58 = sshll.u32 [#allocation7], 4
      %s59 = int_to_ptr.vmem [resolvable:$true] %s58
      %64 = dma.hbm_to_vmem [thread:$0]  %s57, 2048, %s59, [#allocation8], 64, 64, 4
    $region17: #{vae_forward.1} parent=1 // pred_fallthru
      _
    // Predicated region
    $region18: #{vae_forward.1} parent=1 // pred_check
      _
    $region19: #{vae_forward.1} parent=1 // pred_check_branch
      %66 = sbr.rel (0) target = $region21
    $region20: #{vae_forward.1} parent=1 // pred_region
      %68 = vsyncadd [#allocation8], 0
      %s69 = sshll.u32 %s4, 4
      %s70 = int_to_ptr.hbm [resolvable:$true] %s69
      %s71 = sshll.u32 [#allocation9], 4
      %s72 = int_to_ptr.vmem [resolvable:$true] %s71
      %77 = dma.hbm_to_vmem [thread:$0]  %s70, 1024, %s72, [#allocation8], 64, 64, 4
    $region21: #{vae_forward.1} parent=1 // pred_fallthru
      _
    // Predicated region
    $region22: #{vae_forward.1} parent=1 // pred_check
      _
    $region23: #{vae_forward.1} parent=1 // pred_check_branch
      %79 = sbr.rel (0) target = $region25
    $region24: #{vae_forward.1} parent=1 // pred_region
      _
    $region25: #{vae_forward.1} parent=1 // pred_fallthru
      _
    // Predicated region
    $region26: #{vae_forward.1} parent=1 // pred_check
      _
    $region27: #{vae_forward.1} parent=1 // pred_check_branch
      %81 = sbr.rel (0) target = $region29
    $region28: #{vae_forward.1} parent=1 // pred_region
      _
    $region29: #{vae_forward.1} parent=1 // pred_fallthru
      _
    // Predicated region
    $region30: #{vae_forward.1} parent=1 // pred_check
      _
    $region31: #{vae_forward.1} parent=1 // pred_check_branch
      %83 = sbr.rel (0) target = $region33
    $region32: #{vae_forward.1} parent=1 // pred_region
      %85 = dma.done [#allocation3], 128
    $region33: #{vae_forward.1} parent=1 // pred_fallthru
      _
    // Predicated region
    $region34: #{vae_forward.1} parent=1 // pred_check
      _
    $region35: #{vae_forward.1} parent=1 // pred_check_branch
      %87 = sbr.rel (0) target = $region37
    $region36: #{vae_forward.1} parent=1 // pred_region
      %89 = dma.done [#allocation5], 2048
    $region37: #{vae_forward.1} parent=1 // pred_fallthru
      _
    // Predicated region
    $region38: #{vae_forward.1} parent=1 // pred_check
      _
    $region39: #{vae_forward.1} parent=1 // pred_check_branch
      %91 = sbr.rel (0) target = $region41
    $region40: #{vae_forward.1} parent=1 // pred_region
      %93 = dma.done [#allocation5], 8192
    $region41: #{vae_forward.1} parent=1 // pred_fallthru
      _
    // Predicated region
    $region42: #{vae_forward.1} parent=1 // pred_check
      _
    $region43: #{vae_forward.1} parent=1 // pred_check_branch
      %95 = sbr.rel (0) target = $region45
    $region44: #{vae_forward.1} parent=1 // pred_region
      %97 = dma.done [#allocation8], 2048
    $region45: #{vae_forward.1} parent=1 // pred_fallthru
      _
    // Predicated region
    $region46: #{vae_forward.1} parent=1 // pred_check
      _
    $region47: #{vae_forward.1} parent=1 // pred_check_branch
      %99 = sbr.rel (0) target = $region49
    $region48: #{vae_forward.1} parent=1 // pred_region
      %101 = dma.done [#allocation8], 1024
    $region49: #{vae_forward.1} parent=1 // pred_fallthru
      _
    %v103 = vld [vmem:[%s5] ss:$4 sm:$0xf]
    %s104 = scalar_lea.vmem %s5, 1
    %v105 = vld [vmem:[%s104] ss:$4 sm:$0x3]
    %v106 = vld [vmem:[%s5 + $0x2] sm:$0x1]
    %v107 = vld [vmem:[%s5 + $0x3] sm:$0x1]
    %v108 = vld [vmem:[#allocation2] sm:$0xff]
    %v109 = vpack.c.bf16 %v108, %v108
    %v110 = vld [vmem:[#allocation4] sm:$0xff]
    %v111 = vld [vmem:[#allocation4 + $0x8] sm:$0xff]
    %v112 = vld [vmem:[#allocation4 + $0x10] sm:$0xff]
    %v113 = vld [vmem:[#allocation4 + $0x18] sm:$0xff]
    %v114 = vld [vmem:[#allocation4 + $0x20] sm:$0xff]
    %v115 = vld [vmem:[#allocation4 + $0x28] sm:$0xff]
    %v116 = vld [vmem:[#allocation4 + $0x30] sm:$0xff]
    %v117 = vld [vmem:[#allocation4 + $0x38] sm:$0xff]
    %v118 = vld [vmem:[#allocation4 + $0x40] sm:$0xff]
    %v119 = vld [vmem:[#allocation4 + $0x48] sm:$0xff]
    %v120 = vld [vmem:[#allocation4 + $0x50] sm:$0xff]
    %v121 = vld [vmem:[#allocation4 + $0x58] sm:$0xff]
    %v122 = vld [vmem:[#allocation4 + $0x60] sm:$0xff]
    %v123 = vld [vmem:[#allocation4 + $0x68] sm:$0xff]
    %v124 = vld [vmem:[#allocation4 + $0x70] sm:$0xff]
    %v125 = vld [vmem:[#allocation4 + $0x78] sm:$0xff]
    %v127 = vperm.slane %v103, 0
    %v128 = vperm.slane %v103, 1
    %v129 = vperm.slane %v103, 2
    %v130 = vperm.slane %v103, 3
    %v151 = vunpack.c.l.b16 %v110
    %v152 = vunpack.c.h.b16 %v110
    %v153 = vunpack.c.l.b16 %v111
    %v154 = vunpack.c.h.b16 %v111
    %v155 = vunpack.c.l.b16 %v112
    %v156 = vunpack.c.h.b16 %v112
    %v157 = vunpack.c.l.b16 %v113
    %v158 = vunpack.c.h.b16 %v113
    %v159 = vunpack.c.l.b16 %v114
    %v160 = vunpack.c.h.b16 %v114
    %v161 = vunpack.c.l.b16 %v115
    %v162 = vunpack.c.h.b16 %v115
    %v163 = vunpack.c.l.b16 %v116
    %v164 = vunpack.c.h.b16 %v116
    %v165 = vunpack.c.l.b16 %v117
    %v166 = vunpack.c.h.b16 %v117
    %v167 = vunpack.c.l.b16 %v118
    %v168 = vunpack.c.h.b16 %v118
    %v169 = vunpack.c.l.b16 %v119
    %v170 = vunpack.c.h.b16 %v119
    %v171 = vunpack.c.l.b16 %v120
    %v172 = vunpack.c.h.b16 %v120
    %v173 = vunpack.c.l.b16 %v121
    %v174 = vunpack.c.h.b16 %v121
    %v175 = vunpack.c.l.b16 %v122
    %v176 = vunpack.c.h.b16 %v122
    %v177 = vunpack.c.l.b16 %v123
    %v178 = vunpack.c.h.b16 %v123
    %v179 = vunpack.c.l.b16 %v124
    %v180 = vunpack.c.h.b16 %v124
    %v181 = vunpack.c.l.b16 %v125
    %v182 = vunpack.c.h.b16 %v125
    %v183 = vpack.c.b16 %v155, %v151
    %v184 = vpack.c.b16 %v156, %v152
    %v185 = vpack.c.b16 %v157, %v153
    %v186 = vpack.c.b16 %v158, %v154
    %v187 = vpack.c.b16 %v163, %v159
    %v188 = vpack.c.b16 %v164, %v160
    %v189 = vpack.c.b16 %v165, %v161
    %v190 = vpack.c.b16 %v166, %v162
    %v191 = vpack.c.b16 %v171, %v167
    %v192 = vpack.c.b16 %v172, %v168
    %v193 = vpack.c.b16 %v173, %v169
    %v194 = vpack.c.b16 %v174, %v170
    %v195 = vpack.c.b16 %v179, %v175
    %v196 = vpack.c.b16 %v180, %v176
    %v197 = vpack.c.b16 %v181, %v177
    %v198 = vpack.c.b16 %v182, %v178
    %vm215 = vcmask 523264
    %v217 = vsel %vm215, %v109, 0
    %219 = vmatpush.bf16.msra.mxu0 0
    %220 = vmatpush.bf16.msra.mxu0 0
    %221 = vmatpush.bf16.msra.mxu0 0
    %222 = vmatpush.bf16.msra.mxu0 0
    %223 = vmatpush.bf16.msra.mxu0 %v195
    %224 = vmatpush.bf16.msra.mxu0 %v191
    %225 = vmatpush.bf16.msra.mxu0 %v187
    %226 = vmatpush.bf16.msra.mxu0 %v183
    %227 = vmatmul.bf16.gmra.mxu0 %v217
    %v228 = vpop.f32.mrf.mxu0
    %v229 = vadd.f32 %v127, %v228
    %v230 = vpop.f32.mrf.mxu0
    %231 = vdwg.mxu0
    %232 = vmatpush.bf16.msra.mxu0 0
    %233 = vmatpush.bf16.msra.mxu0 0
    %234 = vmatpush.bf16.msra.mxu0 0
    %235 = vmatpush.bf16.msra.mxu0 0
    %236 = vmatpush.bf16.msra.mxu0 %v196
    %237 = vmatpush.bf16.msra.mxu0 %v192
    %238 = vmatpush.bf16.msra.mxu0 %v188
    %239 = vmatpush.bf16.msra.mxu0 %v184
    %240 = vmatmul.bf16.gmra.mxu0 %v217
    %v241 = vpop.f32.mrf.mxu0
    %v242 = vadd.f32 %v128, %v241
    %v243 = vpop.f32.mrf.mxu0
    %244 = vdwg.mxu0
    %245 = vmatpush.bf16.msra.mxu0 0
    %246 = vmatpush.bf16.msra.mxu0 0
    %247 = vmatpush.bf16.msra.mxu0 0
    %248 = vmatpush.bf16.msra.mxu0 0
    %249 = vmatpush.bf16.msra.mxu0 %v197
    %250 = vmatpush.bf16.msra.mxu0 %v193
    %251 = vmatpush.bf16.msra.mxu0 %v189
    %252 = vmatpush.bf16.msra.mxu0 %v185
    %253 = vmatmul.bf16.gmra.mxu0 %v217
    %v254 = vpop.f32.mrf.mxu0
    %v255 = vadd.f32 %v129, %v254
    %v256 = vpop.f32.mrf.mxu0
    %257 = vdwg.mxu0
    %258 = vmatpush.bf16.msra.mxu0 0
    %259 = vmatpush.bf16.msra.mxu0 0
    %260 = vmatpush.bf16.msra.mxu0 0
    %261 = vmatpush.bf16.msra.mxu0 0
    %262 = vmatpush.bf16.msra.mxu0 %v198
    %263 = vmatpush.bf16.msra.mxu0 %v194
    %264 = vmatpush.bf16.msra.mxu0 %v190
    %265 = vmatpush.bf16.msra.mxu0 %v186
    %266 = vmatmul.bf16.gmra.mxu0 %v217
    %v267 = vpop.f32.mrf.mxu0
    %v268 = vadd.f32 %v130, %v267
    %v269 = vpop.f32.mrf.mxu0
    %270 = vdwg.mxu0
    %v271 = vmax.f32 %v229, 0.0
    %v272 = vmax.f32 %v242, 0.0
    %v273 = vmax.f32 %v255, 0.0
    %v274 = vmax.f32 %v268, 0.0
    %v275 = vpack.c.bf16 %v271, %v271
    %v276 = vpack.c.bf16 %v272, %v272
    %v277 = vpack.c.bf16 %v273, %v273
    %v278 = vpack.c.bf16 %v274, %v274
    %v279 = vld [vmem:[#allocation6] sm:$0xff]
    %v280 = vld [vmem:[#allocation6 + $0x8] sm:$0xff]
    %v281 = vld [vmem:[#allocation6 + $0x10] sm:$0xff]
    %v282 = vld [vmem:[#allocation6 + $0x18] sm:$0xff]
    %v283 = vld [vmem:[#allocation6 + $0x20] sm:$0xff]
    %v284 = vld [vmem:[#allocation6 + $0x28] sm:$0xff]
    %v285 = vld [vmem:[#allocation6 + $0x30] sm:$0xff]
    %v286 = vld [vmem:[#allocation6 + $0x38] sm:$0xff]
    %v287 = vld [vmem:[#allocation6 + $0x40] sm:$0xff]
    %v288 = vld [vmem:[#allocation6 + $0x48] sm:$0xff]
    %v289 = vld [vmem:[#allocation6 + $0x50] sm:$0xff]
    %v290 = vld [vmem:[#allocation6 + $0x58] sm:$0xff]
    %v291 = vld [vmem:[#allocation6 + $0x60] sm:$0xff]
    %v292 = vld [vmem:[#allocation6 + $0x68] sm:$0xff]
    %v293 = vld [vmem:[#allocation6 + $0x70] sm:$0xff]
    %v294 = vld [vmem:[#allocation6 + $0x78] sm:$0xff]
    %v295 = vld [vmem:[#allocation6 + $0x80] sm:$0xff]
    %v296 = vld [vmem:[#allocation6 + $0x88] sm:$0xff]
    %v297 = vld [vmem:[#allocation6 + $0x90] sm:$0xff]
    %v298 = vld [vmem:[#allocation6 + $0x98] sm:$0xff]
    %v299 = vld [vmem:[#allocation6 + $0xa0] sm:$0xff]
    %v300 = vld [vmem:[#allocation6 + $0xa8] sm:$0xff]
    %v301 = vld [vmem:[#allocation6 + $0xb0] sm:$0xff]
    %v302 = vld [vmem:[#allocation6 + $0xb8] sm:$0xff]
    %v303 = vld [vmem:[#allocation6 + $0xc0] sm:$0xff]
    %v304 = vld [vmem:[#allocation6 + $0xc8] sm:$0xff]
    %v305 = vld [vmem:[#allocation6 + $0xd0] sm:$0xff]
    %v306 = vld [vmem:[#allocation6 + $0xd8] sm:$0xff]
    %v307 = vld [vmem:[#allocation6 + $0xe0] sm:$0xff]
    %v308 = vld [vmem:[#allocation6 + $0xe8] sm:$0xff]
    %v309 = vld [vmem:[#allocation6 + $0xf0] sm:$0xff]
    %v310 = vld [vmem:[#allocation6 + $0xf8] sm:$0xff]
    %v311 = vld [vmem:[#allocation6 + $0x100] sm:$0xff]
    %v312 = vld [vmem:[#allocation6 + $0x108] sm:$0xff]
    %v313 = vld [vmem:[#allocation6 + $0x110] sm:$0xff]
    %v314 = vld [vmem:[#allocation6 + $0x118] sm:$0xff]
    %v315 = vld [vmem:[#allocation6 + $0x120] sm:$0xff]
    %v316 = vld [vmem:[#allocation6 + $0x128] sm:$0xff]
    %v317 = vld [vmem:[#allocation6 + $0x130] sm:$0xff]
    %v318 = vld [vmem:[#allocation6 + $0x138] sm:$0xff]
    %v319 = vld [vmem:[#allocation6 + $0x140] sm:$0xff]
    %v320 = vld [vmem:[#allocation6 + $0x148] sm:$0xff]
    %v321 = vld [vmem:[#allocation6 + $0x150] sm:$0xff]
    %v322 = vld [vmem:[#allocation6 + $0x158] sm:$0xff]
    %v323 = vld [vmem:[#allocation6 + $0x160] sm:$0xff]
    %v324 = vld [vmem:[#allocation6 + $0x168] sm:$0xff]
    %v325 = vld [vmem:[#allocation6 + $0x170] sm:$0xff]
    %v326 = vld [vmem:[#allocation6 + $0x178] sm:$0xff]
    %v327 = vld [vmem:[#allocation6 + $0x180] sm:$0xff]
    %v328 = vld [vmem:[#allocation6 + $0x188] sm:$0xff]
    %v329 = vld [vmem:[#allocation6 + $0x190] sm:$0xff]
    %v330 = vld [vmem:[#allocation6 + $0x198] sm:$0xff]
    %v331 = vld [vmem:[#allocation6 + $0x1a0] sm:$0xff]
    %v332 = vld [vmem:[#allocation6 + $0x1a8] sm:$0xff]
    %v333 = vld [vmem:[#allocation6 + $0x1b0] sm:$0xff]
    %v334 = vld [vmem:[#allocation6 + $0x1b8] sm:$0xff]
    %v335 = vld [vmem:[#allocation6 + $0x1c0] sm:$0xff]
    %v336 = vld [vmem:[#allocation6 + $0x1c8] sm:$0xff]
    %v337 = vld [vmem:[#allocation6 + $0x1d0] sm:$0xff]
    %v338 = vld [vmem:[#allocation6 + $0x1d8] sm:$0xff]
    %v339 = vld [vmem:[#allocation6 + $0x1e0] sm:$0xff]
    %v340 = vld [vmem:[#allocation6 + $0x1e8] sm:$0xff]
    %v341 = vld [vmem:[#allocation6 + $0x1f0] sm:$0xff]
    %v342 = vld [vmem:[#allocation6 + $0x1f8] sm:$0xff]
    %v344 = vperm.slane %v105, 0
    %v345 = vperm.slane %v105, 1
    %v412 = vunpack.c.l.b16 %v279
    %v413 = vunpack.c.h.b16 %v279
    %v414 = vunpack.c.l.b16 %v280
    %v415 = vunpack.c.h.b16 %v280
    %v416 = vunpack.c.l.b16 %v281
    %v417 = vunpack.c.h.b16 %v281
    %v418 = vunpack.c.l.b16 %v282
    %v419 = vunpack.c.h.b16 %v282
    %v420 = vunpack.c.l.b16 %v283
    %v421 = vunpack.c.h.b16 %v283
    %v422 = vunpack.c.l.b16 %v284
    %v423 = vunpack.c.h.b16 %v284
    %v424 = vunpack.c.l.b16 %v285
    %v425 = vunpack.c.h.b16 %v285
    %v426 = vunpack.c.l.b16 %v286
    %v427 = vunpack.c.h.b16 %v286
    %v428 = vunpack.c.l.b16 %v287
    %v429 = vunpack.c.h.b16 %v287
    %v430 = vunpack.c.l.b16 %v288
    %v431 = vunpack.c.h.b16 %v288
    %v432 = vunpack.c.l.b16 %v289
    %v433 = vunpack.c.h.b16 %v289
    %v434 = vunpack.c.l.b16 %v290
    %v435 = vunpack.c.h.b16 %v290
    %v436 = vunpack.c.l.b16 %v291
    %v437 = vunpack.c.h.b16 %v291
    %v438 = vunpack.c.l.b16 %v292
    %v439 = vunpack.c.h.b16 %v292
    %v440 = vunpack.c.l.b16 %v293
    %v441 = vunpack.c.h.b16 %v293
    %v442 = vunpack.c.l.b16 %v294
    %v443 = vunpack.c.h.b16 %v294
    %v444 = vunpack.c.l.b16 %v295
    %v445 = vunpack.c.h.b16 %v295
    %v446 = vunpack.c.l.b16 %v296
    %v447 = vunpack.c.h.b16 %v296
    %v448 = vunpack.c.l.b16 %v297
    %v449 = vunpack.c.h.b16 %v297
    %v450 = vunpack.c.l.b16 %v298
    %v451 = vunpack.c.h.b16 %v298
    %v452 = vunpack.c.l.b16 %v299
    %v453 = vunpack.c.h.b16 %v299
    %v454 = vunpack.c.l.b16 %v300
    %v455 = vunpack.c.h.b16 %v300
    %v456 = vunpack.c.l.b16 %v301
    %v457 = vunpack.c.h.b16 %v301
    %v458 = vunpack.c.l.b16 %v302
    %v459 = vunpack.c.h.b16 %v302
    %v460 = vunpack.c.l.b16 %v303
    %v461 = vunpack.c.h.b16 %v303
    %v462 = vunpack.c.l.b16 %v304
    %v463 = vunpack.c.h.b16 %v304
    %v464 = vunpack.c.l.b16 %v305
    %v465 = vunpack.c.h.b16 %v305
    %v466 = vunpack.c.l.b16 %v306
    %v467 = vunpack.c.h.b16 %v306
    %v468 = vunpack.c.l.b16 %v307
    %v469 = vunpack.c.h.b16 %v307
    %v470 = vunpack.c.l.b16 %v308
    %v471 = vunpack.c.h.b16 %v308
    %v472 = vunpack.c.l.b16 %v309
    %v473 = vunpack.c.h.b16 %v309
    %v474 = vunpack.c.l.b16 %v310
    %v475 = vunpack.c.h.b16 %v310
    %v476 = vunpack.c.l.b16 %v311
    %v477 = vunpack.c.h.b16 %v311
    %v478 = vunpack.c.l.b16 %v312
    %v479 = vunpack.c.h.b16 %v312
    %v480 = vunpack.c.l.b16 %v313
    %v481 = vunpack.c.h.b16 %v313
    %v482 = vunpack.c.l.b16 %v314
    %v483 = vunpack.c.h.b16 %v314
    %v484 = vunpack.c.l.b16 %v315
    %v485 = vunpack.c.h.b16 %v315
    %v486 = vunpack.c.l.b16 %v316
    %v487 = vunpack.c.h.b16 %v316
    %v488 = vunpack.c.l.b16 %v317
    %v489 = vunpack.c.h.b16 %v317
    %v490 = vunpack.c.l.b16 %v318
    %v491 = vunpack.c.h.b16 %v318
    %v492 = vunpack.c.l.b16 %v319
    %v493 = vunpack.c.h.b16 %v319
    %v494 = vunpack.c.l.b16 %v320
    %v495 = vunpack.c.h.b16 %v320
    %v496 = vunpack.c.l.b16 %v321
    %v497 = vunpack.c.h.b16 %v321
    %v498 = vunpack.c.l.b16 %v322
    %v499 = vunpack.c.h.b16 %v322
    %v500 = vunpack.c.l.b16 %v323
    %v501 = vunpack.c.h.b16 %v323
    %v502 = vunpack.c.l.b16 %v324
    %v503 = vunpack.c.h.b16 %v324
    %v504 = vunpack.c.l.b16 %v325
    %v505 = vunpack.c.h.b16 %v325
    %v506 = vunpack.c.l.b16 %v326
    %v507 = vunpack.c.h.b16 %v326
    %v508 = vunpack.c.l.b16 %v327
    %v509 = vunpack.c.h.b16 %v327
    %v510 = vunpack.c.l.b16 %v328
    %v511 = vunpack.c.h.b16 %v328
    %v512 = vunpack.c.l.b16 %v329
    %v513 = vunpack.c.h.b16 %v329
    %v514 = vunpack.c.l.b16 %v330
    %v515 = vunpack.c.h.b16 %v330
    %v516 = vunpack.c.l.b16 %v331
    %v517 = vunpack.c.h.b16 %v331
    %v518 = vunpack.c.l.b16 %v332
    %v519 = vunpack.c.h.b16 %v332
    %v520 = vunpack.c.l.b16 %v333
    %v521 = vunpack.c.h.b16 %v333
    %v522 = vunpack.c.l.b16 %v334
    %v523 = vunpack.c.h.b16 %v334
    %v524 = vunpack.c.l.b16 %v335
    %v525 = vunpack.c.h.b16 %v335
    %v526 = vunpack.c.l.b16 %v336
    %v527 = vunpack.c.h.b16 %v336
    %v528 = vunpack.c.l.b16 %v337
    %v529 = vunpack.c.h.b16 %v337
    %v530 = vunpack.c.l.b16 %v338
    %v531 = vunpack.c.h.b16 %v338
    %v532 = vunpack.c.l.b16 %v339
    %v533 = vunpack.c.h.b16 %v339
    %v534 = vunpack.c.l.b16 %v340
    %v535 = vunpack.c.h.b16 %v340
    %v536 = vunpack.c.l.b16 %v341
    %v537 = vunpack.c.h.b16 %v341
    %v538 = vunpack.c.l.b16 %v342
    %v539 = vunpack.c.h.b16 %v342
    %v540 = vpack.c.b16 %v414, %v412
    %v541 = vpack.c.b16 %v415, %v413
    %v542 = vpack.c.b16 %v418, %v416
    %v543 = vpack.c.b16 %v419, %v417
    %v544 = vpack.c.b16 %v422, %v420
    %v545 = vpack.c.b16 %v423, %v421
    %v546 = vpack.c.b16 %v426, %v424
    %v547 = vpack.c.b16 %v427, %v425
    %v548 = vpack.c.b16 %v430, %v428
    %v549 = vpack.c.b16 %v431, %v429
    %v550 = vpack.c.b16 %v434, %v432
    %v551 = vpack.c.b16 %v435, %v433
    %v552 = vpack.c.b16 %v438, %v436
    %v553 = vpack.c.b16 %v439, %v437
    %v554 = vpack.c.b16 %v442, %v440
    %v555 = vpack.c.b16 %v443, %v441
    %v556 = vpack.c.b16 %v446, %v444
    %v557 = vpack.c.b16 %v447, %v445
    %v558 = vpack.c.b16 %v450, %v448
    %v559 = vpack.c.b16 %v451, %v449
    %v560 = vpack.c.b16 %v454, %v452
    %v561 = vpack.c.b16 %v455, %v453
    %v562 = vpack.c.b16 %v458, %v456
    %v563 = vpack.c.b16 %v459, %v457
    %v564 = vpack.c.b16 %v462, %v460
    %v565 = vpack.c.b16 %v463, %v461
    %v566 = vpack.c.b16 %v466, %v464
    %v567 = vpack.c.b16 %v467, %v465
    %v568 = vpack.c.b16 %v470, %v468
    %v569 = vpack.c.b16 %v471, %v469
    %v570 = vpack.c.b16 %v474, %v472
    %v571 = vpack.c.b16 %v475, %v473
    %v572 = vpack.c.b16 %v478, %v476
    %v573 = vpack.c.b16 %v479, %v477
    %v574 = vpack.c.b16 %v482, %v480
    %v575 = vpack.c.b16 %v483, %v481
    %v576 = vpack.c.b16 %v486, %v484
    %v577 = vpack.c.b16 %v487, %v485
    %v578 = vpack.c.b16 %v490, %v488
    %v579 = vpack.c.b16 %v491, %v489
    %v580 = vpack.c.b16 %v494, %v492
    %v581 = vpack.c.b16 %v495, %v493
    %v582 = vpack.c.b16 %v498, %v496
    %v583 = vpack.c.b16 %v499, %v497
    %v584 = vpack.c.b16 %v502, %v500
    %v585 = vpack.c.b16 %v503, %v501
    %v586 = vpack.c.b16 %v506, %v504
    %v587 = vpack.c.b16 %v507, %v505
    %v588 = vpack.c.b16 %v510, %v508
    %v589 = vpack.c.b16 %v511, %v509
    %v590 = vpack.c.b16 %v514, %v512
    %v591 = vpack.c.b16 %v515, %v513
    %v592 = vpack.c.b16 %v518, %v516
    %v593 = vpack.c.b16 %v519, %v517
    %v594 = vpack.c.b16 %v522, %v520
    %v595 = vpack.c.b16 %v523, %v521
    %v596 = vpack.c.b16 %v526, %v524
    %v597 = vpack.c.b16 %v527, %v525
    %v598 = vpack.c.b16 %v530, %v528
    %v599 = vpack.c.b16 %v531, %v529
    %v600 = vpack.c.b16 %v534, %v532
    %v601 = vpack.c.b16 %v535, %v533
    %v602 = vpack.c.b16 %v538, %v536
    %v603 = vpack.c.b16 %v539, %v537
    %668 = vmatpush.bf16.msra.mxu0 %v554
    %669 = vmatpush.bf16.msra.mxu0 %v552
    %670 = vmatpush.bf16.msra.mxu0 %v550
    %671 = vmatpush.bf16.msra.mxu0 %v548
    %672 = vmatpush.bf16.msra.mxu0 %v546
    %673 = vmatpush.bf16.msra.mxu0 %v544
    %674 = vmatpush.bf16.msra.mxu0 %v542
    %675 = vmatpush.bf16.msra.mxu0 %v540
    %676 = vmatmul.bf16.gmra.mxu0 %v275
    %v677 = vpop.f32.mrf.mxu0
    %v678 = vadd.f32 %v344, %v677
    %v679 = vpop.f32.mrf.mxu0
    %680 = vdwg.mxu0
    %681 = vmatpush.bf16.msra.mxu0 %v570
    %682 = vmatpush.bf16.msra.mxu0 %v568
    %683 = vmatpush.bf16.msra.mxu0 %v566
    %684 = vmatpush.bf16.msra.mxu0 %v564
    %685 = vmatpush.bf16.msra.mxu0 %v562
    %686 = vmatpush.bf16.msra.mxu0 %v560
    %687 = vmatpush.bf16.msra.mxu0 %v558
    %688 = vmatpush.bf16.msra.mxu0 %v556
    %689 = vmatmul.bf16.gmra.mxu0 %v276
    %v690 = vpop.f32.mrf.mxu0
    %v691 = vadd.f32 %v678, %v690
    %v692 = vpop.f32.mrf.mxu0
    %693 = vdwg.mxu0
    %694 = vmatpush.bf16.msra.mxu0 %v586
    %695 = vmatpush.bf16.msra.mxu0 %v584
    %696 = vmatpush.bf16.msra.mxu0 %v582
    %697 = vmatpush.bf16.msra.mxu0 %v580
    %698 = vmatpush.bf16.msra.mxu0 %v578
    %699 = vmatpush.bf16.msra.mxu0 %v576
    %700 = vmatpush.bf16.msra.mxu0 %v574
    %701 = vmatpush.bf16.msra.mxu0 %v572
    %702 = vmatmul.bf16.gmra.mxu0 %v277
    %v703 = vpop.f32.mrf.mxu0
    %v704 = vadd.f32 %v691, %v703
    %v705 = vpop.f32.mrf.mxu0
    %706 = vdwg.mxu0
    %707 = vmatpush.bf16.msra.mxu0 %v602
    %708 = vmatpush.bf16.msra.mxu0 %v600
    %709 = vmatpush.bf16.msra.mxu0 %v598
    %710 = vmatpush.bf16.msra.mxu0 %v596
    %711 = vmatpush.bf16.msra.mxu0 %v594
    %712 = vmatpush.bf16.msra.mxu0 %v592
    %713 = vmatpush.bf16.msra.mxu0 %v590
    %714 = vmatpush.bf16.msra.mxu0 %v588
    %715 = vmatmul.bf16.gmra.mxu0 %v278
    %v716 = vpop.f32.mrf.mxu0
    %v717 = vadd.f32 %v704, %v716
    %v718 = vpop.f32.mrf.mxu0
    %719 = vdwg.mxu0
    %720 = vmatpush.bf16.msra.mxu0 %v555
    %721 = vmatpush.bf16.msra.mxu0 %v553
    %722 = vmatpush.bf16.msra.mxu0 %v551
    %723 = vmatpush.bf16.msra.mxu0 %v549
    %724 = vmatpush.bf16.msra.mxu0 %v547
    %725 = vmatpush.bf16.msra.mxu0 %v545
    %726 = vmatpush.bf16.msra.mxu0 %v543
    %727 = vmatpush.bf16.msra.mxu0 %v541
    %728 = vmatmul.bf16.gmra.mxu0 %v275
    %v729 = vpop.f32.mrf.mxu0
    %v730 = vadd.f32 %v345, %v729
    %v731 = vpop.f32.mrf.mxu0
    %732 = vdwg.mxu0
    %733 = vmatpush.bf16.msra.mxu0 %v571
    %734 = vmatpush.bf16.msra.mxu0 %v569
    %735 = vmatpush.bf16.msra.mxu0 %v567
    %736 = vmatpush.bf16.msra.mxu0 %v565
    %737 = vmatpush.bf16.msra.mxu0 %v563
    %738 = vmatpush.bf16.msra.mxu0 %v561
    %739 = vmatpush.bf16.msra.mxu0 %v559
    %740 = vmatpush.bf16.msra.mxu0 %v557
    %741 = vmatmul.bf16.gmra.mxu0 %v276
    %v742 = vpop.f32.mrf.mxu0
    %v743 = vadd.f32 %v730, %v742
    %v744 = vpop.f32.mrf.mxu0
    %745 = vdwg.mxu0
    %746 = vmatpush.bf16.msra.mxu0 %v587
    %747 = vmatpush.bf16.msra.mxu0 %v585
    %748 = vmatpush.bf16.msra.mxu0 %v583
    %749 = vmatpush.bf16.msra.mxu0 %v581
    %750 = vmatpush.bf16.msra.mxu0 %v579
    %751 = vmatpush.bf16.msra.mxu0 %v577
    %752 = vmatpush.bf16.msra.mxu0 %v575
    %753 = vmatpush.bf16.msra.mxu0 %v573
    %754 = vmatmul.bf16.gmra.mxu0 %v277
    %v755 = vpop.f32.mrf.mxu0
    %v756 = vadd.f32 %v743, %v755
    %v757 = vpop.f32.mrf.mxu0
    %758 = vdwg.mxu0
    %759 = vmatpush.bf16.msra.mxu0 %v603
    %760 = vmatpush.bf16.msra.mxu0 %v601
    %761 = vmatpush.bf16.msra.mxu0 %v599
    %762 = vmatpush.bf16.msra.mxu0 %v597
    %763 = vmatpush.bf16.msra.mxu0 %v595
    %764 = vmatpush.bf16.msra.mxu0 %v593
    %765 = vmatpush.bf16.msra.mxu0 %v591
    %766 = vmatpush.bf16.msra.mxu0 %v589
    %767 = vmatmul.bf16.gmra.mxu0 %v278
    %v768 = vpop.f32.mrf.mxu0
    %v769 = vadd.f32 %v756, %v768
    %v770 = vpop.f32.mrf.mxu0
    %771 = vdwg.mxu0
    %v772 = vmax.f32 %v717, 0.0
    %v773 = vmax.f32 %v769, 0.0
    %v774 = vpack.c.bf16 %v772, %v772
    %v775 = vpack.c.bf16 %v773, %v773
    %v776 = vld [vmem:[#allocation7] sm:$0xf]
    %v777 = vld [vmem:[#allocation7 + $0x4] sm:$0xf]
    %v778 = vld [vmem:[#allocation7 + $0x8] sm:$0xf]
    %v779 = vld [vmem:[#allocation7 + $0xc] sm:$0xf]
    %v780 = vld [vmem:[#allocation7 + $0x10] sm:$0xf]
    %v781 = vld [vmem:[#allocation7 + $0x14] sm:$0xf]
    %v782 = vld [vmem:[#allocation7 + $0x18] sm:$0xf]
    %v783 = vld [vmem:[#allocation7 + $0x1c] sm:$0xf]
    %v784 = vld [vmem:[#allocation7 + $0x20] sm:$0xf]
    %v785 = vld [vmem:[#allocation7 + $0x24] sm:$0xf]
    %v786 = vld [vmem:[#allocation7 + $0x28] sm:$0xf]
    %v787 = vld [vmem:[#allocation7 + $0x2c] sm:$0xf]
    %v788 = vld [vmem:[#allocation7 + $0x30] sm:$0xf]
    %v789 = vld [vmem:[#allocation7 + $0x34] sm:$0xf]
    %v790 = vld [vmem:[#allocation7 + $0x38] sm:$0xf]
    %v791 = vld [vmem:[#allocation7 + $0x3c] sm:$0xf]
    %v792 = vld [vmem:[#allocation7 + $0x40] sm:$0xf]
    %v793 = vld [vmem:[#allocation7 + $0x44] sm:$0xf]
    %v794 = vld [vmem:[#allocation7 + $0x48] sm:$0xf]
    %v795 = vld [vmem:[#allocation7 + $0x4c] sm:$0xf]
    %v796 = vld [vmem:[#allocation7 + $0x50] sm:$0xf]
    %v797 = vld [vmem:[#allocation7 + $0x54] sm:$0xf]
    %v798 = vld [vmem:[#allocation7 + $0x58] sm:$0xf]
    %v799 = vld [vmem:[#allocation7 + $0x5c] sm:$0xf]
    %v800 = vld [vmem:[#allocation7 + $0x60] sm:$0xf]
    %v801 = vld [vmem:[#allocation7 + $0x64] sm:$0xf]
    %v802 = vld [vmem:[#allocation7 + $0x68] sm:$0xf]
    %v803 = vld [vmem:[#allocation7 + $0x6c] sm:$0xf]
    %v804 = vld [vmem:[#allocation7 + $0x70] sm:$0xf]
    %v805 = vld [vmem:[#allocation7 + $0x74] sm:$0xf]
    %v806 = vld [vmem:[#allocation7 + $0x78] sm:$0xf]
    %v807 = vld [vmem:[#allocation7 + $0x7c] sm:$0xf]
    %v808 = vperm.slane %v106, 0
    %v841 = vunpack.c.l.b16 %v776
    %v842 = vunpack.c.l.b16 %v777
    %v843 = vunpack.c.l.b16 %v778
    %v844 = vunpack.c.l.b16 %v779
    %v845 = vunpack.c.l.b16 %v780
    %v846 = vunpack.c.l.b16 %v781
    %v847 = vunpack.c.l.b16 %v782
    %v848 = vunpack.c.l.b16 %v783
    %v849 = vunpack.c.l.b16 %v784
    %v850 = vunpack.c.l.b16 %v785
    %v851 = vunpack.c.l.b16 %v786
    %v852 = vunpack.c.l.b16 %v787
    %v853 = vunpack.c.l.b16 %v788
    %v854 = vunpack.c.l.b16 %v789
    %v855 = vunpack.c.l.b16 %v790
    %v856 = vunpack.c.l.b16 %v791
    %v857 = vunpack.c.l.b16 %v792
    %v858 = vunpack.c.l.b16 %v793
    %v859 = vunpack.c.l.b16 %v794
    %v860 = vunpack.c.l.b16 %v795
    %v861 = vunpack.c.l.b16 %v796
    %v862 = vunpack.c.l.b16 %v797
    %v863 = vunpack.c.l.b16 %v798
    %v864 = vunpack.c.l.b16 %v799
    %v865 = vunpack.c.l.b16 %v800
    %v866 = vunpack.c.l.b16 %v801
    %v867 = vunpack.c.l.b16 %v802
    %v868 = vunpack.c.l.b16 %v803
    %v869 = vunpack.c.l.b16 %v804
    %v870 = vunpack.c.l.b16 %v805
    %v871 = vunpack.c.l.b16 %v806
    %v872 = vunpack.c.l.b16 %v807
    %v873 = vpack.c.b16 %v842, %v841
    %v874 = vpack.c.b16 %v844, %v843
    %v875 = vpack.c.b16 %v846, %v845
    %v876 = vpack.c.b16 %v848, %v847
    %v877 = vpack.c.b16 %v850, %v849
    %v878 = vpack.c.b16 %v852, %v851
    %v879 = vpack.c.b16 %v854, %v853
    %v880 = vpack.c.b16 %v856, %v855
    %v881 = vpack.c.b16 %v858, %v857
    %v882 = vpack.c.b16 %v860, %v859
    %v883 = vpack.c.b16 %v862, %v861
    %v884 = vpack.c.b16 %v864, %v863
    %v885 = vpack.c.b16 %v866, %v865
    %v886 = vpack.c.b16 %v868, %v867
    %v887 = vpack.c.b16 %v870, %v869
    %v888 = vpack.c.b16 %v872, %v871
    %905 = vmatpush.bf16.msra.mxu0 %v880
    %906 = vmatpush.bf16.msra.mxu0 %v879
    %907 = vmatpush.bf16.msra.mxu0 %v878
    %908 = vmatpush.bf16.msra.mxu0 %v877
    %909 = vmatpush.bf16.msra.mxu0 %v876
    %910 = vmatpush.bf16.msra.mxu0 %v875
    %911 = vmatpush.bf16.msra.mxu0 %v874
    %912 = vmatpush.bf16.msra.mxu0 %v873
    %913 = vmatmul.bf16.gmra.mxu0 %v774
    %v914 = vpop.f32.mrf.mxu0
    %v915 = vadd.f32 %v808, %v914
    %v916 = vpop.f32.mrf.mxu0
    %917 = vdwg.mxu0
    %918 = vmatpush.bf16.msra.mxu0 %v888
    %919 = vmatpush.bf16.msra.mxu0 %v887
    %920 = vmatpush.bf16.msra.mxu0 %v886
    %921 = vmatpush.bf16.msra.mxu0 %v885
    %922 = vmatpush.bf16.msra.mxu0 %v884
    %923 = vmatpush.bf16.msra.mxu0 %v883
    %924 = vmatpush.bf16.msra.mxu0 %v882
    %925 = vmatpush.bf16.msra.mxu0 %v881
    %926 = vmatmul.bf16.gmra.mxu0 %v775
    %v927 = vpop.f32.mrf.mxu0
    %v928 = vadd.f32 %v915, %v927
    %v929 = vpop.f32.mrf.mxu0
    %930 = vdwg.mxu0
    %v931 = vmax.f32 %v928, 0.0
    %v932 = vpack.c.bf16 %v931, %v931
    %v933 = vld [vmem:[#allocation9] sm:$0xf]
    %v934 = vld [vmem:[#allocation9 + $0x4] sm:$0xf]
    %v935 = vld [vmem:[#allocation9 + $0x8] sm:$0xf]
    %v936 = vld [vmem:[#allocation9 + $0xc] sm:$0xf]
    %v937 = vld [vmem:[#allocation9 + $0x10] sm:$0xf]
    %v938 = vld [vmem:[#allocation9 + $0x14] sm:$0xf]
    %v939 = vld [vmem:[#allocation9 + $0x18] sm:$0xf]
    %v940 = vld [vmem:[#allocation9 + $0x1c] sm:$0xf]
    %v941 = vld [vmem:[#allocation9 + $0x20] sm:$0xf]
    %v942 = vld [vmem:[#allocation9 + $0x24] sm:$0xf]
    %v943 = vld [vmem:[#allocation9 + $0x28] sm:$0xf]
    %v944 = vld [vmem:[#allocation9 + $0x2c] sm:$0xf]
    %v945 = vld [vmem:[#allocation9 + $0x30] sm:$0xf]
    %v946 = vld [vmem:[#allocation9 + $0x34] sm:$0xf]
    %v947 = vld [vmem:[#allocation9 + $0x38] sm:$0xf]
    %v948 = vld [vmem:[#allocation9 + $0x3c] sm:$0xf]
    %v949 = vperm.slane %v107, 0
    %v966 = vunpack.c.l.b16 %v933
    %v967 = vunpack.c.l.b16 %v934
    %v968 = vunpack.c.l.b16 %v935
    %v969 = vunpack.c.l.b16 %v936
    %v970 = vunpack.c.l.b16 %v937
    %v971 = vunpack.c.l.b16 %v938
    %v972 = vunpack.c.l.b16 %v939
    %v973 = vunpack.c.l.b16 %v940
    %v974 = vunpack.c.l.b16 %v941
    %v975 = vunpack.c.l.b16 %v942
    %v976 = vunpack.c.l.b16 %v943
    %v977 = vunpack.c.l.b16 %v944
    %v978 = vunpack.c.l.b16 %v945
    %v979 = vunpack.c.l.b16 %v946
    %v980 = vunpack.c.l.b16 %v947
    %v981 = vunpack.c.l.b16 %v948
    %v982 = vpack.c.b16 %v967, %v966
    %v983 = vpack.c.b16 %v969, %v968
    %v984 = vpack.c.b16 %v971, %v970
    %v985 = vpack.c.b16 %v973, %v972
    %v986 = vpack.c.b16 %v975, %v974
    %v987 = vpack.c.b16 %v977, %v976
    %v988 = vpack.c.b16 %v979, %v978
    %v989 = vpack.c.b16 %v981, %v980
    %998 = vmatpush.bf16.msra.mxu0 %v989
    %999 = vmatpush.bf16.msra.mxu0 %v988
    %1000 = vmatpush.bf16.msra.mxu0 %v987
    %1001 = vmatpush.bf16.msra.mxu0 %v986
    %1002 = vmatpush.bf16.msra.mxu0 %v985
    %1003 = vmatpush.bf16.msra.mxu0 %v984
    %1004 = vmatpush.bf16.msra.mxu0 %v983
    %1005 = vmatpush.bf16.msra.mxu0 %v982
    %1006 = vmatmul.bf16.gmra.mxu0 %v932
    %v1007 = vpop.f32.mrf.mxu0
    %v1008 = vadd.f32 %v949, %v1007
    %v1009 = vpop.f32.mrf.mxu0
    %1010 = vdwg.mxu0
    %1011 = vrot.lane.b32.xlu0 %v1008, 64
    %v1012 = vpop.permute.xlu0 %1011
    %v1013 = vmul.f32 %v1012, 0.5
    %v1014 = vmul.f32 %v1013, 1.442695
    %v1015 = vpow.pop %v1014
    %v1016 = vld [vmem:[%s6] sm:$0xff]
    %vm1017 = vcmask 130048
    %v1018 = vsel %vm1017, %v1016, 0.0
    %v1019 = vmul.f32 %v1018, %v1015
    %v1020 = vadd.f32 %v1008, %v1019
    %1021 = vst [vmem:[%s7] sm:$0xff] %v1020
    // Predicated region
    $region50: #{vae_forward.1} parent=1 // pred_check
      _
    $region51: #{vae_forward.1} parent=1 // pred_check_branch
      %1023 = sbr.rel (0) target = $region53
    $region52: #{vae_forward.1} parent=1 // pred_region
      _
    $region53: #{vae_forward.1} parent=1 // pred_fallthru
      _
    // Predicated region
    $region54: #{vae_forward.1} parent=1 // pred_check
      _
    $region55: #{vae_forward.1} parent=1 // pred_check_branch
      %1025 = sbr.rel (0) target = $region57
    $region56: #{vae_forward.1} parent=1 // pred_region
      _
    $region57: #{vae_forward.1} parent=1 // pred_fallthru
      _
    %1026 = vsyncpa [#allocation3], 1
    %1027 = vsyncpa [#allocation5], 1
    %1028 = vsyncpa [#allocation8], 1

</llo_original>
